<compile_context>
chip_gen: v5e
topology: v5e:2x2
jax: 0.10.0
libtpu: 0.0.40
codegen_flags: <defaults>
</compile_context>

<pallas_src>
import functools

import jax
import jax.numpy as jnp
import numpy as np
from jax import lax
from jax.experimental import pallas as pl
from jax.experimental.pallas import tpu as pltpu


# ------------------------------ fused Pallas kernel --------------------------

def _fused_spin_kernel(coord_ref, spin_ref, atype_ref,                    # per-tile inputs
                       w_in_ref, b1_ref, wo_ref, bo_ref, vsm_ref,         # resident params
                       slab_ref, ered_ref,                                # outputs
                       *, nloc, tm, nt_rows, ntypes_real):
    t = pl.program_id(1)

    coord = coord_ref[0]          # [3, TM]  xyz on sublanes, atoms on lanes
    spin = spin_ref[0]            # [3, TM]
    atype = atype_ref[0]          # [1, TM]  int32

    # ---- type one-hot for real | virtual atoms (atoms on lanes) -------------
    atype_both = jnp.concatenate([atype, atype + ntypes_real], axis=-1)     # [1, 2TM]
    type_iota = lax.broadcasted_iota(jnp.int32, (nt_rows, 2 * tm), 0)
    onehot = (type_iota == atype_both).astype(jnp.float32)                  # [NT, 2TM]

    # ---- virtual_scale_mask[atype] gathered via the one-hot (real half) -----
    scale = jnp.sum(vsm_ref[...] * onehot[:, :tm], axis=0, keepdims=True)   # [1, TM]

    # ---- process_spin_input: virtual coords, concat real|virtual on lanes ---
    vcoord = coord + spin * scale                                           # [3, TM]
    coord_both = jnp.concatenate([coord, vcoord], axis=-1)                  # [3, 2TM]

    # ---- synthetic backbone MLP (transposed: features x atoms) --------------
    # Layer 1 is ONE MXU dot: feat rows 0..2 are coordinates, rows 3.. are the
    # type one-hot (the type-embedding gather is folded into w_in columns in
    # the wrapper).  bf16 operands, f32 accumulation.
    feat = jnp.concatenate([coord_both, onehot], axis=0).astype(jnp.bfloat16)  # [K, 2TM]
    pre = jnp.dot(w_in_ref[...], feat, preferred_element_type=jnp.float32)     # [H, 2TM]
    h = jnp.tanh(pre + b1_ref[...])                                            # f32 (v5e-safe)
    # output rows: 0..2 = "energy_derv_r" (forces), 3 = atomic energy, 4..7 = 0
    o = jnp.dot(wo_ref[...], h.astype(jnp.bfloat16),
                preferred_element_type=jnp.float32) + bo_ref[...]              # [8, 2TM]

    f_real, f_mag = o[0:3, :tm], o[0:3, tm:]
    e_real, e_virt = o[3:4, :tm], o[3:4, tm:]

    # ---- process_spin_output(add_mag=True, virtual_scale=True) --------------
    # single lane- and sublane-dense [8, TM] store
    slab = jnp.concatenate([f_real + f_mag,      # rows 0-2: force
                            f_mag * scale,       # rows 3-5: force_mag
                            e_real,              # row 6: atomic energy (real)
                            scale], axis=0)      # row 7: virtual scale (-> mask_mag)
    slab_ref[...] = slab[None]

    # ---- energy_redu partial: sum of real + virtual atomic energies ---------
    lane = lax.broadcasted_iota(jnp.int32, (1, tm), 1) + t * tm
    valid = (lane < nloc).astype(jnp.float32)            # mask out padded atoms
    epart = jnp.sum((e_real + e_virt) * valid)
    ered_ref[...] = jnp.full(ered_ref.shape, epart, jnp.float32)


# ------------------------------ JAX wrapper ----------------------------------

def spin_energy_forward(coord, atype, spin, params, *, ntypes_real, block_atoms=2048):
    """Forward pass of SpinEnergyModel (synthetic backbone), fully fused."""
    nf, nloc = atype.shape
    coord = coord.reshape(nf, nloc, 3).astype(jnp.float32)
    spin = spin.reshape(nf, nloc, 3).astype(jnp.float32)

    emb = params["type_embedding"].astype(jnp.float32)        # [2*ntypes_real, Temb]
    w1 = params["w1"].astype(jnp.float32)                     # [3 + Temb, H]
    b1 = params["b1"].astype(jnp.float32)                     # [1, H]
    wo = params["wo"].astype(jnp.float32)                     # [H, 4] (col 0 energy, 1:4 force)
    bo = params["bo"].astype(jnp.float32)                     # [1, 4]
    vsm = params["virtual_scale_mask"].astype(jnp.float32)    # [ntypes_real]
    hidden = w1.shape[1]
    nt2 = 2 * ntypes_real

    # layer-1 K axis: 3 coord rows + nt2 one-hot rows, padded to a sublane multiple
    k_in = max(8, pl.cdiv(nt2 + 3, 8) * 8)
    nt_rows = k_in - 3

    # ---- atom tiling: atoms on the lane axis (multiples of 128) -------------
    assert block_atoms % 128 == 0
    tm = min(block_atoms, pl.cdiv(nloc, 128) * 128)
    nloc_pad = pl.cdiv(nloc, tm) * tm
    n_tiles = nloc_pad // tm

    # ---- layout plumbing: transpose per-atom tensors to [nf, feat, atoms] ---
    def lane_major(x):
        x = jnp.transpose(x, (0, 2, 1))
        return jnp.pad(x, ((0, 0), (0, 0), (0, nloc_pad - nloc)))

    coord_t = lane_major(coord)                                   # [nf, 3, nloc_pad]
    spin_t = lane_major(spin)                                     # [nf, 3, nloc_pad]
    atype_t = jnp.pad(atype.astype(jnp.int32)[:, None, :],
                      ((0, 0), (0, 0), (0, nloc_pad - nloc)))     # [nf, 1, nloc_pad]

    # ---- refold tiny parameters: layer-1 weight = [coord cols | folded emb | 0]
    w1cT = jnp.transpose(w1[:3])                                  # [H, 3]
    w1eT = jnp.transpose(emb @ w1[3:])                            # [H, nt2]  (gather folded)
    w_in = jnp.concatenate(
        [w1cT, w1eT, jnp.zeros((hidden, nt_rows - nt2), jnp.float32)],
        axis=1).astype(jnp.bfloat16)                              # [H, k_in]  bf16 MXU operand
    b1T = jnp.reshape(b1, (hidden, 1))                            # [H, 1] f32
    woT = jnp.concatenate([jnp.transpose(wo[:, 1:4]),             # rows 0-2: force
                           jnp.transpose(wo[:, 0:1]),             # row 3: energy
                           jnp.zeros((4, hidden), jnp.float32)],
                          axis=0).astype(jnp.bfloat16)            # [8, H] bf16
    boT = jnp.concatenate([jnp.reshape(bo[0, 1:4], (3, 1)),
                           jnp.reshape(bo[0, 0:1], (1, 1)),
                           jnp.zeros((4, 1), jnp.float32)], axis=0)   # [8, 1] f32
    vsm_col = jnp.reshape(jnp.pad(vsm, (0, nt_rows - ntypes_real)), (nt_rows, 1))

    kernel = functools.partial(_fused_spin_kernel, nloc=nloc, tm=tm,
                               nt_rows=nt_rows, ntypes_real=ntypes_real)

    def const_spec(shape):  # resident parameter: same block for every grid point
        return pl.BlockSpec(shape, lambda f, t: (0,) * len(shape))

    slab, ered = pl.pallas_call(
        kernel,
        grid=(nf, n_tiles),
        in_specs=[
            pl.BlockSpec((1, 3, tm), lambda f, t: (f, 0, t)),     # coord_t
            pl.BlockSpec((1, 3, tm), lambda f, t: (f, 0, t)),     # spin_t
            pl.BlockSpec((1, 1, tm), lambda f, t: (f, 0, t)),     # atype_t
            const_spec((hidden, k_in)),                           # w_in (coords + folded emb)
            const_spec((hidden, 1)),                              # b1T
            const_spec((8, hidden)),                              # woT
            const_spec((8, 1)),                                   # boT
            const_spec((nt_rows, 1)),                             # vsm_col
        ],
        out_specs=(
            pl.BlockSpec((1, 8, tm), lambda f, t: (f, 0, t)),        # lane-dense output slab
            pl.BlockSpec((1, 1, 8, 128), lambda f, t: (f, t, 0, 0)),  # per-tile energy partials
        ),
        out_shape=(
            jax.ShapeDtypeStruct((nf, 8, nloc_pad), jnp.float32),
            jax.ShapeDtypeStruct((nf, n_tiles, 8, 128), jnp.float32),
        ),
        compiler_params=pltpu.CompilerParams(
            dimension_semantics=("parallel", "parallel"),
            vmem_limit_bytes=32 * 1024 * 1024,
        ),
    )(coord_t, spin_t, atype_t, w_in, b1T, woT, boT, vsm_col)

    # ---- layout plumbing back to the module's output shapes -----------------
    slab = slab[:, :, :nloc]
    force = jnp.transpose(slab[:, 0:3, :], (0, 2, 1))             # [nf, nloc, 3]
    force_mag = jnp.transpose(slab[:, 3:6, :], (0, 2, 1))         # [nf, nloc, 3]
    atom_e = jnp.transpose(slab[:, 6:7, :], (0, 2, 1))            # [nf, nloc, 1]
    scale = jnp.transpose(slab[:, 7:8, :], (0, 2, 1))             # [nf, nloc, 1]
    energy = jnp.sum(ered[:, :, 0, 0], axis=1, keepdims=True)     # [nf, 1]

    return {
        "atom_energy": atom_e,        # [nf, nloc, 1]
        "energy": energy,             # [nf, 1]  (sum over real + virtual atoms)
        "mask_mag": scale > 0.0,      # [nf, nloc, 1] bool
        "force": force,               # [nf, nloc, 3]
        "force_mag": force_mag,       # [nf, nloc, 3]
    }


# ------------------------------ pure-JAX reference ----------------------------

def _reference_forward(coord, atype, spin, params, *, ntypes_real):
    """Same math as the kernel (incl. matching bf16 MXU operand casts)."""
    nf, nloc = atype.shape
    coord = coord.reshape(nf, nloc, 3).astype(jnp.float32)
    spin = spin.reshape(nf, nloc, 3).astype(jnp.float32)
    emb = params["type_embedding"].astype(jnp.float32)
    w1 = params["w1"].astype(jnp.float32)
    b1 = params["b1"].astype(jnp.float32)
    wo = params["wo"].astype(jnp.float32)
    bo = params["bo"].astype(jnp.float32)
    vsm = params["virtual_scale_mask"].astype(jnp.float32)

    bf = lambda x: x.astype(jnp.bfloat16).astype(jnp.float32)

    scale = vsm[atype][..., None]                                   # [nf, nloc, 1]
    vcoord = coord + spin * scale
    coord_all = jnp.concatenate([coord, vcoord], axis=1)            # [nf, 2nloc, 3]
    atype_all = jnp.concatenate([atype, atype + ntypes_real], axis=1)

    emb_fold = bf(emb @ w1[3:])                                     # [2*ntypes, H]
    pre = jnp.einsum("fnc,ch->fnh", bf(coord_all), bf(w1[:3])) + emb_fold[atype_all]
    h = jnp.tanh(pre + b1)
    o = jnp.einsum("fnh,hk->fnk", bf(h), bf(wo)) + bo               # [nf, 2nloc, 4]
    e, f = o[..., 0:1], o[..., 1:4]
    e_real, e_virt = e[:, :nloc], e[:, nloc:]
    f_real, f_mag = f[:, :nloc], f[:, nloc:]
    return {
        "atom_energy": e_real,
        "energy": jnp.sum(e_real + e_virt, axis=(1, 2))[:, None],
        "mask_mag": scale > 0.0,
        "force": f_real + f_mag,
        "force_mag": f_mag * scale,
    }


# ------------------------------ main ------------------------------------------

if __name__ == "__main__":
    key = jax.random.PRNGKey(0)
    nf, nloc = 2, 8
    ntypes_real = 2
    temb = 13            # type-embedding width -> feature dim D = 3 + 13 = 16
    hidden = 128         # MXU-friendly hidden width

    k = jax.random.split(key, 8)
    coord = jax.random.normal(k[0], (nf, nloc * 3), jnp.float32)
    spin = 0.1 * jax.random.normal(k[1], (nf, nloc * 3), jnp.float32)
    atype = jax.random.randint(k[2], (nf, nloc), 0, ntypes_real, jnp.int32)

    params = {
        # only type 0 carries spin (virtual scale 0.3); type 1 has none
        "virtual_scale_mask": jnp.array([0.3, 0.0], jnp.float32),
        "type_embedding": 0.1 * jax.random.normal(
            k[3], (2 * ntypes_real, temb), jnp.float32),
        "w1": 0.2 * jax.random.normal(k[4], (3 + temb, hidden), jnp.float32),
        "b1": 0.05 * jax.random.normal(k[5], (1, hidden), jnp.float32),
        "wo": 0.2 * jax.random.normal(k[6], (hidden, 4), jnp.float32),
        "bo": 0.05 * jax.random.normal(k[7], (1, 4), jnp.float32),
    }

    fwd = jax.jit(functools.partial(spin_energy_forward, ntypes_real=ntypes_real))
    out = fwd(coord, atype, spin, params)
    jax.block_until_ready(out)

    assert out["atom_energy"].shape == (nf, nloc, 1)
    assert out["energy"].shape == (nf, 1)
    assert out["mask_mag"].shape == (nf, nloc, 1)
    assert out["force"].shape == (nf, nloc, 3)
    assert out["force_mag"].shape == (nf, nloc, 3)

    ref = jax.jit(functools.partial(_reference_forward, ntypes_real=ntypes_real))(
        coord, atype, spin, params)
    jax.block_until_ready(ref)
    np.testing.assert_allclose(np.asarray(out["atom_energy"]),
                               np.asarray(ref["atom_energy"]), rtol=2e-2, atol=2e-2)
    np.testing.assert_allclose(np.asarray(out["energy"]),
                               np.asarray(ref["energy"]), rtol=2e-2, atol=2e-2)
    np.testing.assert_allclose(np.asarray(out["force"]),
                               np.asarray(ref["force"]), rtol=2e-2, atol=2e-2)
    np.testing.assert_allclose(np.asarray(out["force_mag"]),
                               np.asarray(ref["force_mag"]), rtol=2e-2, atol=2e-2)
    np.testing.assert_array_equal(np.asarray(out["mask_mag"]),
                                  np.asarray(ref["mask_mag"]))
    print("KERNEL_OK")
</pallas_src>

<mosaic_0001>
module attributes {stable_mosaic.version = 11 : i64} {
  func.func @_fused_spin_kernel(%arg0: i32, %arg1: i32, %arg2: memref<1x3x128xf32, #tpu.memory_space<vmem>>, %arg3: memref<1x3x128xf32, #tpu.memory_space<vmem>>, %arg4: memref<1x1x128xi32, #tpu.memory_space<vmem>>, %arg5: memref<128x8xbf16, #tpu.memory_space<vmem>>, %arg6: memref<128x1xf32, #tpu.memory_space<vmem>>, %arg7: memref<8x128xbf16, #tpu.memory_space<vmem>>, %arg8: memref<8x1xf32, #tpu.memory_space<vmem>>, %arg9: memref<5x1xf32, #tpu.memory_space<vmem>>, %arg10: memref<1x8x128xf32, #tpu.memory_space<vmem>>, %arg11: memref<1x1x8x128xf32, #tpu.memory_space<vmem>>) attributes {dimension_semantics = [#tpu.dimension_semantics<parallel>, #tpu.dimension_semantics<parallel>], iteration_bounds = array<i64: 2, 1>, scalar_prefetch = 0 : i64, scratch_operands = 0 : i64, tpu.core_type = #tpu.core_type<tc>, window_params = [{transform_indices = @transform_0, window_bounds = array<i64: 1, 3, 128>}, {transform_indices = @transform_1, window_bounds = array<i64: 1, 3, 128>}, {transform_indices = @transform_2, window_bounds = array<i64: 1, 1, 128>}, {pipeline_mode = #tpu.pipeline_mode<synchronous>, transform_indices = @transform_3, window_bounds = array<i64: 128, 8>}, {pipeline_mode = #tpu.pipeline_mode<synchronous>, transform_indices = @transform_4, window_bounds = array<i64: 128, 1>}, {pipeline_mode = #tpu.pipeline_mode<synchronous>, transform_indices = @transform_5, window_bounds = array<i64: 8, 128>}, {pipeline_mode = #tpu.pipeline_mode<synchronous>, transform_indices = @transform_6, window_bounds = array<i64: 8, 1>}, {pipeline_mode = #tpu.pipeline_mode<synchronous>, transform_indices = @transform_7, window_bounds = array<i64: 5, 1>}, {transform_indices = @transform_8, window_bounds = array<i64: 1, 8, 128>}, {transform_indices = @transform_9, window_bounds = array<i64: 1, 1, 8, 128>}]} {
    %c0 = arith.constant 0 : index
    %c0_0 = arith.constant 0 : index
    %c0_1 = arith.constant 0 : index
    %0 = vector.load %arg2[%c0, %c0_0, %c0_1] : memref<1x3x128xf32, #tpu.memory_space<vmem>>, vector<1x3x128xf32>
    %1 = vector.shape_cast %0 : vector<1x3x128xf32> to vector<3x128xf32>
    %c0_2 = arith.constant 0 : index
    %c0_3 = arith.constant 0 : index
    %c0_4 = arith.constant 0 : index
    %2 = vector.load %arg3[%c0_2, %c0_3, %c0_4] : memref<1x3x128xf32, #tpu.memory_space<vmem>>, vector<1x3x128xf32>
    %3 = vector.shape_cast %2 : vector<1x3x128xf32> to vector<3x128xf32>
    %c0_5 = arith.constant 0 : index
    %c0_6 = arith.constant 0 : index
    %c0_7 = arith.constant 0 : index
    %4 = vector.load %arg4[%c0_5, %c0_6, %c0_7] : memref<1x1x128xi32, #tpu.memory_space<vmem>>, vector<1x1x128xi32>
    %5 = vector.shape_cast %4 : vector<1x1x128xi32> to vector<1x128xi32>
    %c2_i32 = arith.constant 2 : i32
    %6 = vector.broadcast %c2_i32 : i32 to vector<1x128xi32>
    %7 = arith.addi %5, %6 : vector<1x128xi32>
    %8 = tpu.concatenate %5, %7 in 1 : vector<1x128xi32>, vector<1x128xi32> -> vector<1x256xi32>
    %9 = tpu.iota {dimensions = array<i32: 0>} : vector<5x256xi32>
    %10 = vector.broadcast %8 : vector<1x256xi32> to vector<5x256xi32>
    %11 = arith.cmpi eq, %9, %10 : vector<5x256xi32>
    %12 = arith.extui %11 : vector<5x256xi1> to vector<5x256xi32>
    %13 = arith.sitofp %12 : vector<5x256xi32> to vector<5x256xf32>
    %c0_8 = arith.constant 0 : index
    %c0_9 = arith.constant 0 : index
    %14 = vector.load %arg9[%c0_8, %c0_9] : memref<5x1xf32, #tpu.memory_space<vmem>>, vector<5x1xf32>
    %15 = vector.extract_strided_slice %13 {offsets = [0, 0], sizes = [5, 128], strides = [1, 1]} : vector<5x256xf32> to vector<5x128xf32>
    %16 = vector.broadcast %14 : vector<5x1xf32> to vector<5x128xf32>
    %17 = arith.mulf %16, %15 : vector<5x128xf32>
    %cst = arith.constant dense<0.000000e+00> : vector<128xf32>
    %18 = vector.multi_reduction <add>, %17, %cst [0] : vector<5x128xf32> to vector<128xf32>
    %19 = vector.shape_cast %18 : vector<128xf32> to vector<1x128xf32>
    %20 = vector.broadcast %19 : vector<1x128xf32> to vector<3x128xf32>
    %21 = arith.mulf %3, %20 : vector<3x128xf32>
    %22 = arith.addf %1, %21 : vector<3x128xf32>
    %23 = tpu.concatenate %1, %22 in 1 : vector<3x128xf32>, vector<3x128xf32> -> vector<3x256xf32>
    %24 = tpu.concatenate %23, %13 in 0 : vector<3x256xf32>, vector<5x256xf32> -> vector<8x256xf32>
    %25 = arith.truncf %24 : vector<8x256xf32> to vector<8x256xbf16>
    %c0_10 = arith.constant 0 : index
    %c0_11 = arith.constant 0 : index
    %26 = vector.load %arg5[%c0_10, %c0_11] : memref<128x8xbf16, #tpu.memory_space<vmem>>, vector<128x8xbf16>
    %cst_12 = arith.constant dense<0.000000e+00> : vector<128x256xf32>
    %27 = tpu.matmul %26, %25, %cst_12 {dimension_numbers = #tpu.dot_dimension_numbers<[1], [0], [0], [1], [0, 0, 1, 1], [], []>} : vector<128x8xbf16>, vector<8x256xbf16>, vector<128x256xf32> -> vector<128x256xf32>
    %c0_13 = arith.constant 0 : index
    %c0_14 = arith.constant 0 : index
    %28 = vector.load %arg6[%c0_13, %c0_14] : memref<128x1xf32, #tpu.memory_space<vmem>>, vector<128x1xf32>
    %29 = vector.broadcast %28 : vector<128x1xf32> to vector<128x256xf32>
    %30 = arith.addf %27, %29 : vector<128x256xf32>
    %31 = math.tanh %30 : vector<128x256xf32>
    %c0_15 = arith.constant 0 : index
    %c0_16 = arith.constant 0 : index
    %32 = vector.load %arg7[%c0_15, %c0_16] : memref<8x128xbf16, #tpu.memory_space<vmem>>, vector<8x128xbf16>
    %33 = arith.truncf %31 : vector<128x256xf32> to vector<128x256xbf16>
    %cst_17 = arith.constant dense<0.000000e+00> : vector<8x256xf32>
    %34 = tpu.matmul %32, %33, %cst_17 {dimension_numbers = #tpu.dot_dimension_numbers<[1], [0], [0], [1], [0, 0, 1, 1], [], []>} : vector<8x128xbf16>, vector<128x256xbf16>, vector<8x256xf32> -> vector<8x256xf32>
    %c0_18 = arith.constant 0 : index
    %c0_19 = arith.constant 0 : index
    %35 = vector.load %arg8[%c0_18, %c0_19] : memref<8x1xf32, #tpu.memory_space<vmem>>, vector<8x1xf32>
    %36 = vector.broadcast %35 : vector<8x1xf32> to vector<8x256xf32>
    %37 = arith.addf %34, %36 : vector<8x256xf32>
    %38 = vector.extract_strided_slice %37 {offsets = [0, 0], sizes = [3, 128], strides = [1, 1]} : vector<8x256xf32> to vector<3x128xf32>
    %39 = vector.extract_strided_slice %37 {offsets = [0, 128], sizes = [3, 128], strides = [1, 1]} : vector<8x256xf32> to vector<3x128xf32>
    %40 = vector.extract_strided_slice %37 {offsets = [3, 0], sizes = [1, 128], strides = [1, 1]} : vector<8x256xf32> to vector<1x128xf32>
    %41 = vector.extract_strided_slice %37 {offsets = [3, 128], sizes = [1, 128], strides = [1, 1]} : vector<8x256xf32> to vector<1x128xf32>
    %42 = arith.addf %38, %39 : vector<3x128xf32>
    %43 = vector.broadcast %19 : vector<1x128xf32> to vector<3x128xf32>
    %44 = arith.mulf %39, %43 : vector<3x128xf32>
    %45 = tpu.concatenate %42, %44, %40, %19 in 0 : vector<3x128xf32>, vector<3x128xf32>, vector<1x128xf32>, vector<1x128xf32> -> vector<8x128xf32>
    %46 = vector.shape_cast %45 : vector<8x128xf32> to vector<1x8x128xf32>
    %c0_20 = arith.constant 0 : index
    %c0_21 = arith.constant 0 : index
    %c0_22 = arith.constant 0 : index
    %47 = vector.load %arg10[%c0_20, %c0_21, %c0_22] : memref<1x8x128xf32, #tpu.memory_space<vmem>>, vector<1x8x128xf32>
    tpu.vector_store %arg10[%c0_20, %c0_21, %c0_22], %46 {strides = array<i32>} : memref<1x8x128xf32, #tpu.memory_space<vmem>>, vector<1x8x128xf32>,
    %48 = tpu.iota {dimensions = array<i32: 1>} : vector<1x128xi32>
    %c128_i32 = arith.constant 128 : i32
    %49 = arith.muli %arg1, %c128_i32 : i32
    %50 = vector.broadcast %49 : i32 to vector<1x128xi32>
    %51 = arith.addi %48, %50 : vector<1x128xi32>
    %c8_i32 = arith.constant 8 : i32
    %52 = vector.broadcast %c8_i32 : i32 to vector<1x128xi32>
    %53 = arith.cmpi slt, %51, %52 : vector<1x128xi32>
    %54 = arith.extui %53 : vector<1x128xi1> to vector<1x128xi32>
    %55 = arith.sitofp %54 : vector<1x128xi32> to vector<1x128xf32>
    %56 = arith.addf %40, %41 : vector<1x128xf32>
    %57 = arith.mulf %56, %55 : vector<1x128xf32>
    %58 = vector.shape_cast %57 : vector<1x128xf32> to vector<1x1x128xf32>
    %cst_23 = arith.constant dense<0.000000e+00> : vector<1xf32>
    %59 = vector.multi_reduction <add>, %58, %cst_23 [1, 2] : vector<1x1x128xf32> to vector<1xf32>
    %60 = vector.shape_cast %59 : vector<1xf32> to vector<1x1x1xf32>
    %61 = vector.extract %60[0, 0, 0] : f32 from vector<1x1x1xf32>
    %62 = vector.broadcast %61 : f32 to vector<1x1x8x128xf32>
    %c0_24 = arith.constant 0 : index
    %c0_25 = arith.constant 0 : index
    %c0_26 = arith.constant 0 : index
    %c0_27 = arith.constant 0 : index
    %63 = vector.load %arg11[%c0_24, %c0_25, %c0_26, %c0_27] : memref<1x1x8x128xf32, #tpu.memory_space<vmem>>, vector<1x1x8x128xf32>
    tpu.vector_store %arg11[%c0_24, %c0_25, %c0_26, %c0_27], %62 {strides = array<i32>} : memref<1x1x8x128xf32, #tpu.memory_space<vmem>>, vector<1x1x8x128xf32>,
    return
  }
  func.func @transform_0(%arg0: i32, %arg1: i32) -> (i32, i32, i32) {
    %c0_i32 = arith.constant 0 : i32
    %c0_i32_0 = arith.constant 0 : i32
    return %arg0, %c0_i32, %arg1 : i32, i32, i32
  }
  func.func @transform_1(%arg0: i32, %arg1: i32) -> (i32, i32, i32) {
    %c0_i32 = arith.constant 0 : i32
    %c0_i32_0 = arith.constant 0 : i32
    return %arg0, %c0_i32, %arg1 : i32, i32, i32
  }
  func.func @transform_2(%arg0: i32, %arg1: i32) -> (i32, i32, i32) {
    %c0_i32 = arith.constant 0 : i32
    %c0_i32_0 = arith.constant 0 : i32
    return %arg0, %c0_i32, %arg1 : i32, i32, i32
  }
  func.func @transform_3(%arg0: i32, %arg1: i32) -> (i32, i32) {
    %c0_i32 = arith.constant 0 : i32
    %c0_i32_0 = arith.constant 0 : i32
    %c0_i32_1 = arith.constant 0 : i32
    return %c0_i32, %c0_i32_0 : i32, i32
  }
  func.func @transform_4(%arg0: i32, %arg1: i32) -> (i32, i32) {
    %c0_i32 = arith.constant 0 : i32
    %c0_i32_0 = arith.constant 0 : i32
    %c0_i32_1 = arith.constant 0 : i32
    return %c0_i32, %c0_i32_0 : i32, i32
  }
  func.func @transform_5(%arg0: i32, %arg1: i32) -> (i32, i32) {
    %c0_i32 = arith.constant 0 : i32
    %c0_i32_0 = arith.constant 0 : i32
    %c0_i32_1 = arith.constant 0 : i32
    return %c0_i32, %c0_i32_0 : i32, i32
  }
  func.func @transform_6(%arg0: i32, %arg1: i32) -> (i32, i32) {
    %c0_i32 = arith.constant 0 : i32
    %c0_i32_0 = arith.constant 0 : i32
    %c0_i32_1 = arith.constant 0 : i32
    return %c0_i32, %c0_i32_0 : i32, i32
  }
  func.func @transform_7(%arg0: i32, %arg1: i32) -> (i32, i32) {
    %c0_i32 = arith.constant 0 : i32
    %c0_i32_0 = arith.constant 0 : i32
    %c0_i32_1 = arith.constant 0 : i32
    return %c0_i32, %c0_i32_0 : i32, i32
  }
  func.func @transform_8(%arg0: i32, %arg1: i32) -> (i32, i32, i32) {
    %c0_i32 = arith.constant 0 : i32
    %c0_i32_0 = arith.constant 0 : i32
    return %arg0, %c0_i32, %arg1 : i32, i32, i32
  }
  func.func @transform_9(%arg0: i32, %arg1: i32) -> (i32, i32, i32, i32) {
    %c0_i32 = arith.constant 0 : i32
    %c0_i32_0 = arith.constant 0 : i32
    %c0_i32_1 = arith.constant 0 : i32
    return %arg0, %arg1, %c0_i32, %c0_i32_0 : i32, i32, i32, i32
  }
}

</mosaic_0001>

<llo_original>
// kernel: spin_energy_forward.1
$region0: #{spin_energy_forward.1}
  #allocation0 [shape = 'u32[]', space=smem, size = 0x4, offset = 0x4, fixed_abs, tag = 'smem constant byte address 0x4 - core index']
  #allocation1 [shape = 'u32[72,128]{1,0:T(1,128)}', space=vmem, size = 0x9000, scoped, tag = 'internal scratch']
  %s0 = inlined_call_operand.vmem [shape: f32[2,3,128], index: 0, kind: input, shape index: {}]
  %s1 = inlined_call_operand.vmem [shape: f32[2,3,128], index: 1, kind: input, shape index: {}]
  %s2 = inlined_call_operand.vmem [shape: s32[2,1,128], index: 2, kind: input, shape index: {}]
  %s3 = inlined_call_operand.vmem [shape: bf16[128,8], index: 3, kind: input, shape index: {}]
  %s4 = inlined_call_operand.vmem [shape: f32[128,1], index: 4, kind: input, shape index: {}]
  %s5 = inlined_call_operand.vmem [shape: bf16[8,128], index: 5, kind: input, shape index: {}]
  %s6 = inlined_call_operand.vmem [shape: f32[8,1], index: 6, kind: input, shape index: {}]
  %s7 = inlined_call_operand.vmem [shape: f32[5,1], index: 7, kind: input, shape index: {}]
  %s8 = inlined_call_operand.vmem [shape: f32[2,8,128], index: 8, kind: output, shape index: {0}]
  %s9 = inlined_call_operand.vmem [shape: f32[2,1,8,128], index: 9, kind: output, shape index: {1}]
  %10 = xla_tuple %s8, %s9
  %s11 = sld [smem:[#allocation0]]
  $region73: #{spin_energy_forward.1} parent=0
    _
  %s13 = ssub.s32 1, %s11
  %s14 = scalar_select 0, %s13, %s11
  loop: start=0, step=1, limit=4
  $region2: #{spin_energy_forward.1} parent=0 // loop_pre_header
    _
  $region3: #{spin_energy_forward.1} parent=0 // loop_header
    %s16 = sphi 0, %s20
    %p17 = scmp.ge.s32.totalorder %s16, 4
    %s23 = sphi 0, %s35
    %s24 = sphi 0, %s31
    %s25 = sphi 0, %s23
    %s26 = sphi 0, %s24
    %s27 = sphi 0, %s25
    %s28 = sphi 0, %s26
    %s40 = sphi 0, %s42
    %s43 = sphi 0, %s40
    %s44 = sphi 0, %s43
    %s60 = sphi 0, %s44
    %s68 = sphi 0, %s70
    %s71 = sphi 0, %s68
    %s72 = sphi 0, %s71
    %s88 = sphi 0, %s72
    %s96 = sphi 0, %s98
    %s99 = sphi 0, %s96
    %s100 = sphi 0, %s99
    %s116 = sphi 0, %s100
    %s120 = sphi 0, %s120
    %s122 = sphi 0, %s120
    %s123 = sphi 0, %s122
    %s137 = sphi 0, %s123
    %s141 = sphi 0, %s141
    %s143 = sphi 0, %s141
    %s144 = sphi 0, %s143
    %s158 = sphi 0, %s144
    %s162 = sphi 0, %s162
    %s164 = sphi 0, %s162
    %s165 = sphi 0, %s164
    %s179 = sphi 0, %s165
    %s183 = sphi 0, %s183
    %s185 = sphi 0, %s183
    %s186 = sphi 0, %s185
    %s200 = sphi 0, %s186
    %s204 = sphi 0, %s204
    %s206 = sphi 0, %s204
    %s207 = sphi 0, %s206
    %s221 = sphi 0, %s207
    %s229 = sphi 0, %s231
    %s232 = sphi 0, %s229
    %s233 = sphi 0, %s232
    %s249 = sphi 0, %s233
    %s257 = sphi 0, %s259
    %s260 = sphi 0, %s257
    %s261 = sphi 0, %s260
    %s277 = sphi 0, %s261
  $region4: #{spin_energy_forward.1} parent=0 // loop_header_branch
    %19 = sbr.rel (%p17) target = $region8
  $region5: #{spin_energy_forward.1} parent=0 // loop_body
    %s21 = ssub.s32 %s16, 1
    %s22 = ssub.s32 %s16, 2
    %s29 = sadd.s32 1, %s24
    %p30 = scmp.ge.s32.totalorder %s29, 1
    %s31 = scalar_select %p30, 0, %s29
    %s32 = sadd.s32 1, %s23
    %s33 = scalar_select %p30, %s32, %s23
    %p34 = scmp.ge.s32.totalorder %s33, 2
    %s35 = scalar_select %p34, 0, %s33
    %s36 = ssub.s32 %s23, %s35
    %s37 = ssub.s32 %s24, %s31
    %s38 = sor.u32 %s36, %s37
    %p39 = scmp.eq.s32.totalorder %s38, 0
    %s41 = sadd.s32 %s40, 1
    %s42 = scalar_select %p39, %s40, %s41
    %p45 = pneg %p39
    %p46 = scmp.eq.s32.totalorder %s16, 1
    %p47 = por %p45, %p46
    %p48 = scmp.ne.s32.totalorder %s40, %s43
    %p49 = scmp.eq.s32.totalorder %s16, 0
    %p50 = por %p48, %p49
    %p51 = scmp.ne.s32.totalorder %s40, %s43
    %p52 = scmp.eq.s32.totalorder %s21, 1
    %p53 = por %p51, %p52
    %p54 = scmp.ne.s32.totalorder %s43, %s44
    %p55 = scmp.eq.s32.totalorder %s21, 0
    %p56 = por %p54, %p55
    %p57 = scmp.ne.s32.totalorder %s43, %s44
    %p58 = scmp.eq.s32.totalorder %s22, 1
    %p59 = por %p57, %p58
    %p61 = scmp.ne.s32.totalorder %s44, %s60
    %p62 = scmp.eq.s32.totalorder %s22, 0
    %p63 = por %p61, %p62
    %s64 = ssub.s32 %s23, %s35
    %s65 = ssub.s32 %s24, %s31
    %s66 = sor.u32 %s64, %s65
    %p67 = scmp.eq.s32.totalorder %s66, 0
    %s69 = sadd.s32 %s68, 1
    %s70 = scalar_select %p67, %s68, %s69
    %p73 = pneg %p67
    %p74 = scmp.eq.s32.totalorder %s16, 1
    %p75 = por %p73, %p74
    %p76 = scmp.ne.s32.totalorder %s68, %s71
    %p77 = scmp.eq.s32.totalorder %s16, 0
    %p78 = por %p76, %p77
    %p79 = scmp.ne.s32.totalorder %s68, %s71
    %p80 = scmp.eq.s32.totalorder %s21, 1
    %p81 = por %p79, %p80
    %p82 = scmp.ne.s32.totalorder %s71, %s72
    %p83 = scmp.eq.s32.totalorder %s21, 0
    %p84 = por %p82, %p83
    %p85 = scmp.ne.s32.totalorder %s71, %s72
    %p86 = scmp.eq.s32.totalorder %s22, 1
    %p87 = por %p85, %p86
    %p89 = scmp.ne.s32.totalorder %s72, %s88
    %p90 = scmp.eq.s32.totalorder %s22, 0
    %p91 = por %p89, %p90
    %s92 = ssub.s32 %s23, %s35
    %s93 = ssub.s32 %s24, %s31
    %s94 = sor.u32 %s92, %s93
    %p95 = scmp.eq.s32.totalorder %s94, 0
    %s97 = sadd.s32 %s96, 1
    %s98 = scalar_select %p95, %s96, %s97
    %p101 = pneg %p95
    %p102 = scmp.eq.s32.totalorder %s16, 1
    %p103 = por %p101, %p102
    %p104 = scmp.ne.s32.totalorder %s96, %s99
    %p105 = scmp.eq.s32.totalorder %s16, 0
    %p106 = por %p104, %p105
    %p107 = scmp.ne.s32.totalorder %s96, %s99
    %p108 = scmp.eq.s32.totalorder %s21, 1
    %p109 = por %p107, %p108
    %p110 = scmp.ne.s32.totalorder %s99, %s100
    %p111 = scmp.eq.s32.totalorder %s21, 0
    %p112 = por %p110, %p111
    %p113 = scmp.ne.s32.totalorder %s99, %s100
    %p114 = scmp.eq.s32.totalorder %s22, 1
    %p115 = por %p113, %p114
    %p117 = scmp.ne.s32.totalorder %s100, %s116
    %p118 = scmp.eq.s32.totalorder %s22, 0
    %p119 = por %p117, %p118
    %s121 = sadd.s32 %s120, 1
    %p124 = scmp.eq.s32.totalorder %s16, 1
    %p125 = scmp.ne.s32.totalorder %s120, %s122
    %p126 = scmp.eq.s32.totalorder %s16, 0
    %p127 = por %p125, %p126
    %p128 = scmp.ne.s32.totalorder %s120, %s122
    %p129 = scmp.eq.s32.totalorder %s21, 1
    %p130 = por %p128, %p129
    %p131 = scmp.ne.s32.totalorder %s122, %s123
    %p132 = scmp.eq.s32.totalorder %s21, 0
    %p133 = por %p131, %p132
    %p134 = scmp.ne.s32.totalorder %s122, %s123
    %p135 = scmp.eq.s32.totalorder %s22, 1
    %p136 = por %p134, %p135
    %p138 = scmp.ne.s32.totalorder %s123, %s137
    %p139 = scmp.eq.s32.totalorder %s22, 0
    %p140 = por %p138, %p139
    %s142 = sadd.s32 %s141, 1
    %p145 = scmp.eq.s32.totalorder %s16, 1
    %p146 = scmp.ne.s32.totalorder %s141, %s143
    %p147 = scmp.eq.s32.totalorder %s16, 0
    %p148 = por %p146, %p147
    %p149 = scmp.ne.s32.totalorder %s141, %s143
    %p150 = scmp.eq.s32.totalorder %s21, 1
    %p151 = por %p149, %p150
    %p152 = scmp.ne.s32.totalorder %s143, %s144
    %p153 = scmp.eq.s32.totalorder %s21, 0
    %p154 = por %p152, %p153
    %p155 = scmp.ne.s32.totalorder %s143, %s144
    %p156 = scmp.eq.s32.totalorder %s22, 1
    %p157 = por %p155, %p156
    %p159 = scmp.ne.s32.totalorder %s144, %s158
    %p160 = scmp.eq.s32.totalorder %s22, 0
    %p161 = por %p159, %p160
    %s163 = sadd.s32 %s162, 1
    %p166 = scmp.eq.s32.totalorder %s16, 1
    %p167 = scmp.ne.s32.totalorder %s162, %s164
    %p168 = scmp.eq.s32.totalorder %s16, 0
    %p169 = por %p167, %p168
    %p170 = scmp.ne.s32.totalorder %s162, %s164
    %p171 = scmp.eq.s32.totalorder %s21, 1
    %p172 = por %p170, %p171
    %p173 = scmp.ne.s32.totalorder %s164, %s165
    %p174 = scmp.eq.s32.totalorder %s21, 0
    %p175 = por %p173, %p174
    %p176 = scmp.ne.s32.totalorder %s164, %s165
    %p177 = scmp.eq.s32.totalorder %s22, 1
    %p178 = por %p176, %p177
    %p180 = scmp.ne.s32.totalorder %s165, %s179
    %p181 = scmp.eq.s32.totalorder %s22, 0
    %p182 = por %p180, %p181
    %s184 = sadd.s32 %s183, 1
    %p187 = scmp.eq.s32.totalorder %s16, 1
    %p188 = scmp.ne.s32.totalorder %s183, %s185
    %p189 = scmp.eq.s32.totalorder %s16, 0
    %p190 = por %p188, %p189
    %p191 = scmp.ne.s32.totalorder %s183, %s185
    %p192 = scmp.eq.s32.totalorder %s21, 1
    %p193 = por %p191, %p192
    %p194 = scmp.ne.s32.totalorder %s185, %s186
    %p195 = scmp.eq.s32.totalorder %s21, 0
    %p196 = por %p194, %p195
    %p197 = scmp.ne.s32.totalorder %s185, %s186
    %p198 = scmp.eq.s32.totalorder %s22, 1
    %p199 = por %p197, %p198
    %p201 = scmp.ne.s32.totalorder %s186, %s200
    %p202 = scmp.eq.s32.totalorder %s22, 0
    %p203 = por %p201, %p202
    %s205 = sadd.s32 %s204, 1
    %p208 = scmp.eq.s32.totalorder %s16, 1
    %p209 = scmp.ne.s32.totalorder %s204, %s206
    %p210 = scmp.eq.s32.totalorder %s16, 0
    %p211 = por %p209, %p210
    %p212 = scmp.ne.s32.totalorder %s204, %s206
    %p213 = scmp.eq.s32.totalorder %s21, 1
    %p214 = por %p212, %p213
    %p215 = scmp.ne.s32.totalorder %s206, %s207
    %p216 = scmp.eq.s32.totalorder %s21, 0
    %p217 = por %p215, %p216
    %p218 = scmp.ne.s32.totalorder %s206, %s207
    %p219 = scmp.eq.s32.totalorder %s22, 1
    %p220 = por %p218, %p219
    %p222 = scmp.ne.s32.totalorder %s207, %s221
    %p223 = scmp.eq.s32.totalorder %s22, 0
    %p224 = por %p222, %p223
    %s225 = ssub.s32 %s23, %s35
    %s226 = ssub.s32 %s24, %s31
    %s227 = sor.u32 %s225, %s226
    %p228 = scmp.eq.s32.totalorder %s227, 0
    %s230 = sadd.s32 %s229, 1
    %s231 = scalar_select %p228, %s229, %s230
    %p234 = pneg %p228
    %p235 = scmp.eq.s32.totalorder %s16, 1
    %p236 = por %p234, %p235
    %p237 = scmp.ne.s32.totalorder %s229, %s232
    %p238 = scmp.eq.s32.totalorder %s16, 0
    %p239 = por %p237, %p238
    %p240 = scmp.ne.s32.totalorder %s229, %s232
    %p241 = scmp.eq.s32.totalorder %s21, 1
    %p242 = por %p240, %p241
    %p243 = scmp.ne.s32.totalorder %s232, %s233
    %p244 = scmp.eq.s32.totalorder %s21, 0
    %p245 = por %p243, %p244
    %p246 = scmp.ne.s32.totalorder %s232, %s233
    %p247 = scmp.eq.s32.totalorder %s22, 1
    %p248 = por %p246, %p247
    %p250 = scmp.ne.s32.totalorder %s233, %s249
    %p251 = scmp.eq.s32.totalorder %s22, 0
    %p252 = por %p250, %p251
    %s253 = ssub.s32 %s23, %s35
    %s254 = ssub.s32 %s24, %s31
    %s255 = sor.u32 %s253, %s254
    %p256 = scmp.eq.s32.totalorder %s255, 0
    %s258 = sadd.s32 %s257, 1
    %s259 = scalar_select %p256, %s257, %s258
    %p262 = pneg %p256
    %p263 = scmp.eq.s32.totalorder %s16, 1
    %p264 = por %p262, %p263
    %p265 = scmp.ne.s32.totalorder %s257, %s260
    %p266 = scmp.eq.s32.totalorder %s16, 0
    %p267 = por %p265, %p266
    %p268 = scmp.ne.s32.totalorder %s257, %s260
    %p269 = scmp.eq.s32.totalorder %s21, 1
    %p270 = por %p268, %p269
    %p271 = scmp.ne.s32.totalorder %s260, %s261
    %p272 = scmp.eq.s32.totalorder %s21, 0
    %p273 = por %p271, %p272
    %p274 = scmp.ne.s32.totalorder %s260, %s261
    %p275 = scmp.eq.s32.totalorder %s22, 1
    %p276 = por %p274, %p275
    %p278 = scmp.ne.s32.totalorder %s261, %s277
    %p279 = scmp.eq.s32.totalorder %s22, 0
    %p280 = por %p278, %p279
    %p281 = scmp.le.s32.totalorder 1, %s16
    %p282 = scmp.lt.s32.totalorder %s16, 3
    %p283 = pnand %p281, %p282
    %p284 = pneg %p283
    // Predicated region
    $region9: #{spin_energy_forward.1} parent=5 // pred_check
      _
    $region10: #{spin_energy_forward.1} parent=5 // pred_check_branch
      %286 = sbr.rel (%p283) target = $region12
    $region11: #{spin_energy_forward.1} parent=5 // pred_region
      %s287 = ssub.s32 %s16, 1
      // Predicated region
      $region13: #{spin_energy_forward.1} parent=11 // pred_check
        %p288 = pneg %p133
      $region14: #{spin_energy_forward.1} parent=11 // pred_check_branch
        %290 = sbr.rel (%p288) target = $region16
      $region15: #{spin_energy_forward.1} parent=11 // pred_region
        _
      $region16: #{spin_energy_forward.1} parent=11 // pred_fallthru
        _
      // Predicated region
      $region17: #{spin_energy_forward.1} parent=11 // pred_check
        %p291 = pneg %p154
      $region18: #{spin_energy_forward.1} parent=11 // pred_check_branch
        %293 = sbr.rel (%p291) target = $region20
      $region19: #{spin_energy_forward.1} parent=11 // pred_region
        _
      $region20: #{spin_energy_forward.1} parent=11 // pred_fallthru
        _
      // Predicated region
      $region21: #{spin_energy_forward.1} parent=11 // pred_check
        %p294 = pneg %p175
      $region22: #{spin_energy_forward.1} parent=11 // pred_check_branch
        %296 = sbr.rel (%p294) target = $region24
      $region23: #{spin_energy_forward.1} parent=11 // pred_region
        _
      $region24: #{spin_energy_forward.1} parent=11 // pred_fallthru
        _
      // Predicated region
      $region25: #{spin_energy_forward.1} parent=11 // pred_check
        %p297 = pneg %p196
      $region26: #{spin_energy_forward.1} parent=11 // pred_check_branch
        %299 = sbr.rel (%p297) target = $region28
      $region27: #{spin_energy_forward.1} parent=11 // pred_region
        _
      $region28: #{spin_energy_forward.1} parent=11 // pred_fallthru
        _
      // Predicated region
      $region29: #{spin_energy_forward.1} parent=11 // pred_check
        %p300 = pneg %p217
      $region30: #{spin_energy_forward.1} parent=11 // pred_check_branch
        %302 = sbr.rel (%p300) target = $region32
      $region31: #{spin_energy_forward.1} parent=11 // pred_region
        _
      $region32: #{spin_energy_forward.1} parent=11 // pred_fallthru
        _
    $region12: #{spin_energy_forward.1} parent=5 // pred_fallthru
      _
    %p303 = scmp.lt.s32.totalorder %s16, 2
    // Predicated region
    $region33: #{spin_energy_forward.1} parent=5 // pred_check
      %p304 = pneg %p303
    $region34: #{spin_energy_forward.1} parent=5 // pred_check_branch
      %306 = sbr.rel (%p304) target = $region36
    $region35: #{spin_energy_forward.1} parent=5 // pred_region
      // Predicated region
      $region37: #{spin_energy_forward.1} parent=35 // pred_check
        %p307 = pneg %p50
      $region38: #{spin_energy_forward.1} parent=35 // pred_check_branch
        %309 = sbr.rel (%p307) target = $region40
      $region39: #{spin_energy_forward.1} parent=35 // pred_region
        %p310 = scmp.lt.s32.totalorder %s23, 1
        %s311 = scalar_select %p310, %s23, 1
        %p312 = scmp.lt.s32.totalorder %s24, 0
        %s313 = scalar_select %p312, %s24, 0
        %s314 = sadd.s32 %s313, %s311
        %s315 = smul.addr %s314, 4
        %s316 = scalar_lea.vmem %s0, %s315
      $region40: #{spin_energy_forward.1} parent=35 // pred_fallthru
        _
      // Predicated region
      $region41: #{spin_energy_forward.1} parent=35 // pred_check
        %p317 = pneg %p78
      $region42: #{spin_energy_forward.1} parent=35 // pred_check_branch
        %319 = sbr.rel (%p317) target = $region44
      $region43: #{spin_energy_forward.1} parent=35 // pred_region
        %p320 = scmp.lt.s32.totalorder %s23, 1
        %s321 = scalar_select %p320, %s23, 1
        %p322 = scmp.lt.s32.totalorder %s24, 0
        %s323 = scalar_select %p322, %s24, 0
        %s324 = sadd.s32 %s323, %s321
        %s325 = smul.addr %s324, 4
        %s326 = scalar_lea.vmem %s1, %s325
      $region44: #{spin_energy_forward.1} parent=35 // pred_fallthru
        _
      // Predicated region
      $region45: #{spin_energy_forward.1} parent=35 // pred_check
        %p327 = pneg %p106
      $region46: #{spin_energy_forward.1} parent=35 // pred_check_branch
        %329 = sbr.rel (%p327) target = $region48
      $region47: #{spin_energy_forward.1} parent=35 // pred_region
        %p330 = scmp.lt.s32.totalorder %s23, 1
        %s331 = scalar_select %p330, %s23, 1
        %p332 = scmp.lt.s32.totalorder %s24, 0
        %s333 = scalar_select %p332, %s24, 0
        %s334 = sadd.s32 %s333, %s331
        %s335 = scalar_lea.vmem %s2, %s334
      $region48: #{spin_energy_forward.1} parent=35 // pred_fallthru
        _
    $region36: #{spin_energy_forward.1} parent=5 // pred_fallthru
      _
    %p336 = scmp.le.s32.totalorder 1, %s16
    %p337 = scmp.lt.s32.totalorder %s16, 3
    %p338 = pnand %p336, %p337
    %p339 = pneg %p338
    // Predicated region
    $region49: #{spin_energy_forward.1} parent=5 // pred_check
      _
    $region50: #{spin_energy_forward.1} parent=5 // pred_check_branch
      %341 = sbr.rel (%p338) target = $region52
    $region51: #{spin_energy_forward.1} parent=5 // pred_region
      %s342 = ssub.s32 %s16, 1
      %p343 = scmp.lt.s32.totalorder %s25, 1
      %s344 = scalar_select %p343, %s25, 1
      %p345 = scmp.lt.s32.totalorder %s26, 0
      %s346 = scalar_select %p345, %s26, 0
      %s347 = sadd.s32 %s346, %s344
      %s348 = smul.addr %s347, 4
      %s349 = scalar_lea.vmem %s0, %s348
      %p350 = pneg %p56
      %p351 = pneg %p53
      %p352 = scmp.lt.s32.totalorder %s25, 1
      %s353 = scalar_select %p352, %s25, 1
      %p354 = scmp.lt.s32.totalorder %s26, 0
      %s355 = scalar_select %p354, %s26, 0
      %s356 = sadd.s32 %s355, %s353
      %s357 = smul.addr %s356, 4
      %s358 = scalar_lea.vmem %s1, %s357
      %p359 = pneg %p84
      %p360 = pneg %p81
      %p361 = scmp.lt.s32.totalorder %s25, 1
      %s362 = scalar_select %p361, %s25, 1
      %p363 = scmp.lt.s32.totalorder %s26, 0
      %s364 = scalar_select %p363, %s26, 0
      %s365 = sadd.s32 %s364, %s362
      %s366 = scalar_lea.vmem %s2, %s365
      %p367 = pneg %p112
      %p368 = pneg %p109
      %p369 = pneg %p133
      %p370 = pneg %p130
      %p371 = pneg %p154
      %p372 = pneg %p151
      %p373 = pneg %p175
      %p374 = pneg %p172
      %p375 = pneg %p196
      %p376 = pneg %p193
      %p377 = pneg %p217
      %p378 = pneg %p214
      %p379 = pneg %p245
      %p380 = pneg %p242
      %p381 = scmp.lt.s32.totalorder %s25, 1
      %s382 = scalar_select %p381, %s25, 1
      %p383 = scmp.lt.s32.totalorder %s26, 0
      %s384 = scalar_select %p383, %s26, 0
      %s385 = sadd.s32 %s384, %s382
      %s386 = smul.addr %s385, 8
      %s387 = scalar_lea.vmem %s8, %s386
      %p388 = pneg %p273
      %p389 = pneg %p270
      %p390 = scmp.lt.s32.totalorder %s25, 1
      %s391 = scalar_select %p390, %s25, 1
      %p392 = scmp.lt.s32.totalorder %s26, 0
      %s393 = scalar_select %p392, %s26, 0
      %s394 = sadd.s32 %s393, %s391
      %s395 = smul.addr %s394, 8
      %s396 = scalar_lea.vmem %s9, %s395
      %p397 = scmp.lt.s32.totalorder %s25, 1
      %s398 = scalar_select %p397, %s25, 1
      %p399 = scmp.lt.s32.totalorder %s26, 0
      %s400 = scalar_select %p399, %s26, 0
      %s401 = sadd.s32 %s400, %s398
      %s402 = smul.addr %s401, 4
      %s403 = scalar_lea.vmem %s0, %s402
      %p404 = scmp.lt.s32.totalorder %s25, 1
      %s405 = scalar_select %p404, %s25, 1
      %p406 = scmp.lt.s32.totalorder %s26, 0
      %s407 = scalar_select %p406, %s26, 0
      %s408 = sadd.s32 %s407, %s405
      %s409 = smul.addr %s408, 4
      %s410 = scalar_lea.vmem %s1, %s409
      %p411 = scmp.lt.s32.totalorder %s25, 1
      %s412 = scalar_select %p411, %s25, 1
      %p413 = scmp.lt.s32.totalorder %s26, 0
      %s414 = scalar_select %p413, %s26, 0
      %s415 = sadd.s32 %s414, %s412
      %s416 = scalar_lea.vmem %s2, %s415
      %p417 = scmp.lt.s32.totalorder %s25, 1
      %s418 = scalar_select %p417, %s25, 1
      %p419 = scmp.lt.s32.totalorder %s26, 0
      %s420 = scalar_select %p419, %s26, 0
      %s421 = sadd.s32 %s420, %s418
      %s422 = smul.addr %s421, 8
      %s423 = scalar_lea.vmem %s8, %s422
      %p424 = scmp.lt.s32.totalorder %s25, 1
      %s425 = scalar_select %p424, %s25, 1
      %p426 = scmp.lt.s32.totalorder %s26, 0
      %s427 = scalar_select %p426, %s26, 0
      %s428 = sadd.s32 %s427, %s425
      %s429 = smul.addr %s428, 8
      %s430 = scalar_lea.vmem %s9, %s429
      %v432 = vld [vmem:[%s403] sm:$0x7]
      %v433 = vld [vmem:[%s410] sm:$0x7]
      %v434 = vld [vmem:[%s416] sm:$0x1]
      %v435 = vadd.s32 %v434, 2
      %v436 = vlaneseq
      %v437 = vshrl.u32 %v436, 7
      %v438 = vperm.slane %v434, 0
      %v439 = vperm.slane %v435, 0
      %vm440 = vcmp.eq.s32.totalorder %v437, %v438
      %vm441 = vcmp.eq.s32.totalorder %v437, %v439
      %v442 = vsel %vm440, 1, 0
      %v443 = vsel %vm441, 1, 0
      %v444 = vcvt.s32.f32 %v442
      %v445 = vcvt.s32.f32 %v443
      %v446 = vld [vmem:[%s7] sm:$0x1f]
      %448 = vset.pattern.permute.xlu0 0
      %449 = vperm.xlu0 %448, %v446
      %v450 = vpop.permute.xlu0 %449
      %v452 = vmul.f32 %v450, %v444
      %vm453 = vcmask 1044480
      %v454 = vsel %vm453, %v452, 0.0
      %v455 = vrot.slane %v454, 4
      %v456 = vadd.f32 %v454, %v455
      %v457 = vrot.slane %v456, 2
      %v458 = vadd.f32 %v456, %v457
      %v459 = vrot.slane %v458, 1
      %v460 = vadd.f32 %v458, %v459
      %v461 = vmul.f32 %v433, %v460
      %v462 = vadd.f32 %v432, %v461
      %v465 = vrot.slane %v444, 5
      %v466 = vrot.slane %v445, 5
      %vm469 = vcmask 1042432
      %v470 = vsel %vm469, %v432, %v465
      %v471 = vsel %vm469, %v462, %v466
      %v472 = vpack.c.bf16 %v470, %v470
      %v473 = vpack.c.bf16 %v471, %v471
      %v474 = vld [vmem:[%s3] sm:$0xf]
      %v475 = vld [vmem:[%s3 + $0x4] sm:$0xf]
      %v476 = vld [vmem:[%s3 + $0x8] sm:$0xf]
      %v477 = vld [vmem:[%s3 + $0xc] sm:$0xf]
      %v478 = vld [vmem:[%s3 + $0x10] sm:$0xf]
      %v479 = vld [vmem:[%s3 + $0x14] sm:$0xf]
      %v480 = vld [vmem:[%s3 + $0x18] sm:$0xf]
      %v481 = vld [vmem:[%s3 + $0x1c] sm:$0xf]
      %v482 = vld [vmem:[%s3 + $0x20] sm:$0xf]
      %v483 = vld [vmem:[%s3 + $0x24] sm:$0xf]
      %v484 = vld [vmem:[%s3 + $0x28] sm:$0xf]
      %v485 = vld [vmem:[%s3 + $0x2c] sm:$0xf]
      %v486 = vld [vmem:[%s3 + $0x30] sm:$0xf]
      %v487 = vld [vmem:[%s3 + $0x34] sm:$0xf]
      %v488 = vld [vmem:[%s3 + $0x38] sm:$0xf]
      %v489 = vld [vmem:[%s3 + $0x3c] sm:$0xf]
      %v490 = vld [vmem:[%s4] sm:$0xff]
      %v491 = vld [vmem:[%s4 + $0x8] sm:$0xff]
      %v492 = vld [vmem:[%s4 + $0x10] sm:$0xff]
      %v493 = vld [vmem:[%s4 + $0x18] sm:$0xff]
      %v494 = vld [vmem:[%s4 + $0x20] sm:$0xff]
      %v495 = vld [vmem:[%s4 + $0x28] sm:$0xff]
      %v496 = vld [vmem:[%s4 + $0x30] sm:$0xff]
      %v497 = vld [vmem:[%s4 + $0x38] sm:$0xff]
      %v498 = vld [vmem:[%s4 + $0x40] sm:$0xff]
      %v499 = vld [vmem:[%s4 + $0x48] sm:$0xff]
      %v500 = vld [vmem:[%s4 + $0x50] sm:$0xff]
      %v501 = vld [vmem:[%s4 + $0x58] sm:$0xff]
      %v502 = vld [vmem:[%s4 + $0x60] sm:$0xff]
      %v503 = vld [vmem:[%s4 + $0x68] sm:$0xff]
      %v504 = vld [vmem:[%s4 + $0x70] sm:$0xff]
      %v505 = vld [vmem:[%s4 + $0x78] sm:$0xff]
      %507 = vset.pattern.permute.xlu0 0
      %508 = vperm.xlu0 %507, %v490
      %v509 = vpop.permute.xlu0 %508
      %512 = vset.pattern.permute.xlu0 0
      %513 = vperm.xlu0 %512, %v491
      %v514 = vpop.permute.xlu0 %513
      %517 = vset.pattern.permute.xlu0 0
      %518 = vperm.xlu0 %517, %v492
      %v519 = vpop.permute.xlu0 %518
      %522 = vset.pattern.permute.xlu0 0
      %523 = vperm.xlu0 %522, %v493
      %v524 = vpop.permute.xlu0 %523
      %527 = vset.pattern.permute.xlu0 0
      %528 = vperm.xlu0 %527, %v494
      %v529 = vpop.permute.xlu0 %528
      %532 = vset.pattern.permute.xlu0 0
      %533 = vperm.xlu0 %532, %v495
      %v534 = vpop.permute.xlu0 %533
      %537 = vset.pattern.permute.xlu0 0
      %538 = vperm.xlu0 %537, %v496
      %v539 = vpop.permute.xlu0 %538
      %542 = vset.pattern.permute.xlu0 0
      %543 = vperm.xlu0 %542, %v497
      %v544 = vpop.permute.xlu0 %543
      %547 = vset.pattern.permute.xlu0 0
      %548 = vperm.xlu0 %547, %v498
      %v549 = vpop.permute.xlu0 %548
      %552 = vset.pattern.permute.xlu0 0
      %553 = vperm.xlu0 %552, %v499
      %v554 = vpop.permute.xlu0 %553
      %557 = vset.pattern.permute.xlu0 0
      %558 = vperm.xlu0 %557, %v500
      %v559 = vpop.permute.xlu0 %558
      %562 = vset.pattern.permute.xlu0 0
      %563 = vperm.xlu0 %562, %v501
      %v564 = vpop.permute.xlu0 %563
      %567 = vset.pattern.permute.xlu0 0
      %568 = vperm.xlu0 %567, %v502
      %v569 = vpop.permute.xlu0 %568
      %572 = vset.pattern.permute.xlu0 0
      %573 = vperm.xlu0 %572, %v503
      %v574 = vpop.permute.xlu0 %573
      %577 = vset.pattern.permute.xlu0 0
      %578 = vperm.xlu0 %577, %v504
      %v579 = vpop.permute.xlu0 %578
      %582 = vset.pattern.permute.xlu0 0
      %583 = vperm.xlu0 %582, %v505
      %v584 = vpop.permute.xlu0 %583
      %v602 = vunpack.c.l.b16 %v474
      %v603 = vunpack.c.l.b16 %v475
      %v604 = vunpack.c.l.b16 %v476
      %v605 = vunpack.c.l.b16 %v477
      %v606 = vunpack.c.l.b16 %v478
      %v607 = vunpack.c.l.b16 %v479
      %v608 = vunpack.c.l.b16 %v480
      %v609 = vunpack.c.l.b16 %v481
      %v610 = vunpack.c.l.b16 %v482
      %v611 = vunpack.c.l.b16 %v483
      %v612 = vunpack.c.l.b16 %v484
      %v613 = vunpack.c.l.b16 %v485
      %v614 = vunpack.c.l.b16 %v486
      %v615 = vunpack.c.l.b16 %v487
      %v616 = vunpack.c.l.b16 %v488
      %v617 = vunpack.c.l.b16 %v489
      %v618 = vpack.c.b16 %v603, %v602
      %v619 = vpack.c.b16 %v605, %v604
      %v620 = vpack.c.b16 %v607, %v606
      %v621 = vpack.c.b16 %v609, %v608
      %v622 = vpack.c.b16 %v611, %v610
      %v623 = vpack.c.b16 %v613, %v612
      %v624 = vpack.c.b16 %v615, %v614
      %v625 = vpack.c.b16 %v617, %v616
      %vm626 = vcmask 64512
      %v628 = vsel %vm626, %v618, 0
      %v631 = vsel %vm626, %v619, 0
      %v634 = vsel %vm626, %v620, 0
      %v637 = vsel %vm626, %v621, 0
      %v640 = vsel %vm626, %v622, 0
      %v643 = vsel %vm626, %v623, 0
      %v646 = vsel %vm626, %v624, 0
      %v649 = vsel %vm626, %v625, 0
      %vm651 = vcmask 1043456
      %v653 = vsel %vm651, %v472, 0
      %v656 = vsel %vm651, %v473, 0
      %658 = vmatpush.bf16.msra.mxu0 0
      %659 = vmatpush.bf16.msra.mxu0 0
      %660 = vmatpush.bf16.msra.mxu0 0
      %661 = vmatpush.bf16.msra.mxu0 0
      %662 = vmatpush.bf16.msra.mxu0 0
      %663 = vmatpush.bf16.msra.mxu0 0
      %664 = vmatpush.bf16.msra.mxu0 0
      %665 = vmatpush.bf16.msra.mxu0 %v653
      %666 = vmatmul.bf16.gmra.mxu0 %v628
      %v667 = vpop.f32.mrf.mxu0
      %v668 = vadd.f32 %v509, %v667
      %v669 = vpop.f32.mrf.mxu0
      %v670 = vadd.f32 %v514, %v669
      %671 = vmatmul.bf16.gmra.mxu0 %v631
      %v672 = vpop.f32.mrf.mxu0
      %v673 = vadd.f32 %v519, %v672
      %v674 = vpop.f32.mrf.mxu0
      %v675 = vadd.f32 %v524, %v674
      %676 = vmatmul.bf16.gmra.mxu0 %v634
      %v677 = vpop.f32.mrf.mxu0
      %v678 = vadd.f32 %v529, %v677
      %v679 = vpop.f32.mrf.mxu0
      %v680 = vadd.f32 %v534, %v679
      %681 = vmatmul.bf16.gmra.mxu0 %v637
      %v682 = vpop.f32.mrf.mxu0
      %v683 = vadd.f32 %v539, %v682
      %v684 = vpop.f32.mrf.mxu0
      %v685 = vadd.f32 %v544, %v684
      %686 = vmatmul.bf16.gmra.mxu0 %v640
      %v687 = vpop.f32.mrf.mxu0
      %v688 = vadd.f32 %v549, %v687
      %v689 = vpop.f32.mrf.mxu0
      %v690 = vadd.f32 %v554, %v689
      %691 = vmatmul.bf16.gmra.mxu0 %v643
      %v692 = vpop.f32.mrf.mxu0
      %v693 = vadd.f32 %v559, %v692
      %v694 = vpop.f32.mrf.mxu0
      %v695 = vadd.f32 %v564, %v694
      %696 = vmatmul.bf16.gmra.mxu0 %v646
      %v697 = vpop.f32.mrf.mxu0
      %v698 = vadd.f32 %v569, %v697
      %v699 = vpop.f32.mrf.mxu0
      %v700 = vadd.f32 %v574, %v699
      %701 = vmatmul.bf16.gmra.mxu0 %v649
      %v702 = vpop.f32.mrf.mxu0
      %v703 = vadd.f32 %v579, %v702
      %v704 = vpop.f32.mrf.mxu0
      %v705 = vadd.f32 %v584, %v704
      %706 = vdwg.mxu0
      %707 = vmatpush.bf16.msra.mxu0 0
      %708 = vmatpush.bf16.msra.mxu0 0
      %709 = vmatpush.bf16.msra.mxu0 0
      %710 = vmatpush.bf16.msra.mxu0 0
      %711 = vmatpush.bf16.msra.mxu0 0
      %712 = vmatpush.bf16.msra.mxu0 0
      %713 = vmatpush.bf16.msra.mxu0 0
      %714 = vmatpush.bf16.msra.mxu0 %v656
      %715 = vmatmul.bf16.gmra.mxu0 %v628
      %v716 = vpop.f32.mrf.mxu0
      %v717 = vadd.f32 %v509, %v716
      %v718 = vpop.f32.mrf.mxu0
      %v719 = vadd.f32 %v514, %v718
      %720 = vmatmul.bf16.gmra.mxu0 %v631
      %v721 = vpop.f32.mrf.mxu0
      %v722 = vadd.f32 %v519, %v721
      %v723 = vpop.f32.mrf.mxu0
      %v724 = vadd.f32 %v524, %v723
      %725 = vmatmul.bf16.gmra.mxu0 %v634
      %v726 = vpop.f32.mrf.mxu0
      %v727 = vadd.f32 %v529, %v726
      %v728 = vpop.f32.mrf.mxu0
      %v729 = vadd.f32 %v534, %v728
      %730 = vmatmul.bf16.gmra.mxu0 %v637
      %v731 = vpop.f32.mrf.mxu0
      %v732 = vadd.f32 %v539, %v731
      %v733 = vpop.f32.mrf.mxu0
      %v734 = vadd.f32 %v544, %v733
      %735 = vmatmul.bf16.gmra.mxu0 %v640
      %v736 = vpop.f32.mrf.mxu0
      %v737 = vadd.f32 %v549, %v736
      %v738 = vpop.f32.mrf.mxu0
      %v739 = vadd.f32 %v554, %v738
      %740 = vmatmul.bf16.gmra.mxu0 %v643
      %v741 = vpop.f32.mrf.mxu0
      %v742 = vadd.f32 %v559, %v741
      %v743 = vpop.f32.mrf.mxu0
      %v744 = vadd.f32 %v564, %v743
      %745 = vmatmul.bf16.gmra.mxu0 %v646
      %v746 = vpop.f32.mrf.mxu0
      %v747 = vadd.f32 %v569, %v746
      %v748 = vpop.f32.mrf.mxu0
      %v749 = vadd.f32 %v574, %v748
      %750 = vmatmul.bf16.gmra.mxu0 %v649
      %v751 = vpop.f32.mrf.mxu0
      %v752 = vadd.f32 %v579, %v751
      %v753 = vpop.f32.mrf.mxu0
      %v754 = vadd.f32 %v584, %v753
      %755 = vdwg.mxu0
      %v756 = vtanh.pop %v668
      %v757 = vtanh.pop %v717
      %v758 = vtanh.pop %v670
      %v759 = vtanh.pop %v719
      %v760 = vtanh.pop %v673
      %v761 = vtanh.pop %v722
      %v762 = vtanh.pop %v675
      %v763 = vtanh.pop %v724
      %v764 = vtanh.pop %v678
      %v765 = vtanh.pop %v727
      %v766 = vtanh.pop %v680
      %v767 = vtanh.pop %v729
      %v768 = vtanh.pop %v683
      %v769 = vtanh.pop %v732
      %v770 = vtanh.pop %v685
      %v771 = vtanh.pop %v734
      %v772 = vtanh.pop %v688
      %v773 = vtanh.pop %v737
      %v774 = vtanh.pop %v690
      %v775 = vtanh.pop %v739
      %v776 = vtanh.pop %v693
      %v777 = vtanh.pop %v742
      %v778 = vtanh.pop %v695
      %v779 = vtanh.pop %v744
      %v780 = vtanh.pop %v698
      %v781 = vtanh.pop %v747
      %v782 = vtanh.pop %v700
      %v783 = vtanh.pop %v749
      %v784 = vtanh.pop %v703
      %v785 = vtanh.pop %v752
      %v786 = vtanh.pop %v705
      %v787 = vtanh.pop %v754
      %v788 = vld [vmem:[%s5] sm:$0xf]
      %v789 = vpack.c.bf16 %v758, %v756
      %v790 = vpack.c.bf16 %v759, %v757
      %v791 = vpack.c.bf16 %v762, %v760
      %v792 = vpack.c.bf16 %v763, %v761
      %v793 = vpack.c.bf16 %v766, %v764
      %v794 = vpack.c.bf16 %v767, %v765
      %v795 = vpack.c.bf16 %v770, %v768
      %v796 = vpack.c.bf16 %v771, %v769
      %v797 = vpack.c.bf16 %v774, %v772
      %v798 = vpack.c.bf16 %v775, %v773
      %v799 = vpack.c.bf16 %v778, %v776
      %v800 = vpack.c.bf16 %v779, %v777
      %v801 = vpack.c.bf16 %v782, %v780
      %v802 = vpack.c.bf16 %v783, %v781
      %v803 = vpack.c.bf16 %v786, %v784
      %v804 = vpack.c.bf16 %v787, %v785
      %v805 = vld [vmem:[%s6] sm:$0xff]
      %807 = vset.pattern.permute.xlu0 0
      %808 = vperm.xlu0 %807, %v805
      %v809 = vpop.permute.xlu0 %808
      %811 = vmatpush.bf16.msra.mxu0 %v803
      %812 = vmatpush.bf16.msra.mxu0 %v801
      %813 = vmatpush.bf16.msra.mxu0 %v799
      %814 = vmatpush.bf16.msra.mxu0 %v797
      %815 = vmatpush.bf16.msra.mxu0 %v795
      %816 = vmatpush.bf16.msra.mxu0 %v793
      %817 = vmatpush.bf16.msra.mxu0 %v791
      %818 = vmatpush.bf16.msra.mxu0 %v789
      %819 = vmatmul.bf16.gmra.mxu0 %v788
      %v820 = vpop.f32.mrf.mxu0
      %v821 = vadd.f32 %v809, %v820
      %v822 = vpop.f32.mrf.mxu0
      %823 = vdwg.mxu0
      %824 = vmatpush.bf16.msra.mxu0 %v804
      %825 = vmatpush.bf16.msra.mxu0 %v802
      %826 = vmatpush.bf16.msra.mxu0 %v800
      %827 = vmatpush.bf16.msra.mxu0 %v798
      %828 = vmatpush.bf16.msra.mxu0 %v796
      %829 = vmatpush.bf16.msra.mxu0 %v794
      %830 = vmatpush.bf16.msra.mxu0 %v792
      %831 = vmatpush.bf16.msra.mxu0 %v790
      %832 = vmatmul.bf16.gmra.mxu0 %v788
      %v833 = vpop.f32.mrf.mxu0
      %v834 = vadd.f32 %v809, %v833
      %v835 = vpop.f32.mrf.mxu0
      %836 = vdwg.mxu0
      %v837 = vadd.f32 %v821, %v834
      %v838 = vmul.f32 %v834, %v460
      %v840 = vrot.slane %v838, 5
      %v843 = vrot.slane %v821, 5
      %v845 = vsel %vm469, %v837, %v840
      %vm846 = vcmask 1045504
      %v847 = vsel %vm846, %v845, %v843
      %vm848 = vcmask 1046528
      %v849 = vsel %vm848, %v847, %v460
      %850 = vst [vmem:[%s423] sm:$0xff] %v849
      %v851 = vlaneseq
      %v852 = vand.u32 %v851, 127
      %s853 = smul.u32 %s26, 128
      %v854 = vstv %s853
      %v855 = vadd.s32 %v852, %v854
      %vm856 = vcmp.lt.s32.totalorder %v855, 8
      %v857 = vsel %vm856, 1, 0
      %v858 = vcvt.s32.f32 %v857
      %v859 = vmul.f32 %v837, %v858
      %v861 = vrot.slane %v859, 3
      %vm863 = vcmask 1040384
      %v864 = vsel %vm863, %v861, 0.0
      %865 = vadd.xlane.f32.xlu0 %v864
      %v866 = vpop.xlane.xlu0 %865
      %v867 = vrot.slane %v866, 4
      %v868 = vadd.f32 %v866, %v867
      %v869 = vrot.slane %v868, 2
      %v870 = vadd.f32 %v868, %v869
      %v871 = vrot.slane %v870, 1
      %v872 = vadd.f32 %v870, %v871
      %s873 = vtos %v872
      %v874 = vstv %s873
      %875 = vst [vmem:[%s430] sm:$0xff] %v874
      %p876 = scmp.lt.s32.totalorder %s25, 1
      %s877 = scalar_select %p876, %s25, 1
      %p878 = scmp.lt.s32.totalorder %s26, 0
      %s879 = scalar_select %p878, %s26, 0
      %s880 = sadd.s32 %s879, %s877
      %s881 = smul.addr %s880, 8
      %s882 = scalar_lea.vmem %s8, %s881
      %p883 = scmp.lt.s32.totalorder %s25, 1
      %s884 = scalar_select %p883, %s25, 1
      %p885 = scmp.lt.s32.totalorder %s26, 0
      %s886 = scalar_select %p885, %s26, 0
      %s887 = sadd.s32 %s886, %s884
      %s888 = smul.addr %s887, 8
      %s889 = scalar_lea.vmem %s9, %s888
      // Predicated region
      $region53: #{spin_energy_forward.1} parent=51 // pred_check
        %p890 = pneg %p242
      $region54: #{spin_energy_forward.1} parent=51 // pred_check_branch
        %892 = sbr.rel (%p890) target = $region56
      $region55: #{spin_energy_forward.1} parent=51 // pred_region
        _
      $region56: #{spin_energy_forward.1} parent=51 // pred_fallthru
        _
      // Predicated region
      $region57: #{spin_energy_forward.1} parent=51 // pred_check
        %p893 = pneg %p270
      $region58: #{spin_energy_forward.1} parent=51 // pred_check_branch
        %895 = sbr.rel (%p893) target = $region60
      $region59: #{spin_energy_forward.1} parent=51 // pred_region
        _
      $region60: #{spin_energy_forward.1} parent=51 // pred_fallthru
        _
    $region52: #{spin_energy_forward.1} parent=5 // pred_fallthru
      _
    %p896 = scmp.le.s32.totalorder 2, %s16
    // Predicated region
    $region61: #{spin_energy_forward.1} parent=5 // pred_check
      %p897 = pneg %p896
    $region62: #{spin_energy_forward.1} parent=5 // pred_check_branch
      %899 = sbr.rel (%p897) target = $region64
    $region63: #{spin_energy_forward.1} parent=5 // pred_region
      %s900 = ssub.s32 %s16, 2
      // Predicated region
      $region65: #{spin_energy_forward.1} parent=63 // pred_check
        %p901 = pneg %p248
      $region66: #{spin_energy_forward.1} parent=63 // pred_check_branch
        %903 = sbr.rel (%p901) target = $region68
      $region67: #{spin_energy_forward.1} parent=63 // pred_region
        %p904 = scmp.lt.s32.totalorder %s27, 1
        %s905 = scalar_select %p904, %s27, 1
        %p906 = scmp.lt.s32.totalorder %s28, 0
        %s907 = scalar_select %p906, %s28, 0
        %s908 = sadd.s32 %s907, %s905
        %s909 = smul.addr %s908, 8
        %s910 = scalar_lea.vmem %s8, %s909
      $region68: #{spin_energy_forward.1} parent=63 // pred_fallthru
        _
      // Predicated region
      $region69: #{spin_energy_forward.1} parent=63 // pred_check
        %p911 = pneg %p276
      $region70: #{spin_energy_forward.1} parent=63 // pred_check_branch
        %913 = sbr.rel (%p911) target = $region72
      $region71: #{spin_energy_forward.1} parent=63 // pred_region
        %p914 = scmp.lt.s32.totalorder %s27, 1
        %s915 = scalar_select %p914, %s27, 1
        %p916 = scmp.lt.s32.totalorder %s28, 0
        %s917 = scalar_select %p916, %s28, 0
        %s918 = sadd.s32 %s917, %s915
        %s919 = smul.addr %s918, 8
        %s920 = scalar_lea.vmem %s9, %s919
      $region72: #{spin_energy_forward.1} parent=63 // pred_fallthru
        _
    $region64: #{spin_energy_forward.1} parent=5 // pred_fallthru
      _
  $region6: #{spin_energy_forward.1} parent=0 // loop_footer
    %s20 = sadd.s32 1, %s16
  $region7: #{spin_energy_forward.1} parent=0 // loop_footer_branch
    %15 = sbr.rel target = $region3
  $region8: #{spin_energy_forward.1} parent=0 // loop_exit
    _

</llo_original>
